<compile_context>
chip_gen: v6e
topology: v6e:2x2x1
jax: 0.10.0
libtpu: 0.0.40
codegen_flags: <defaults>
</compile_context>

<pallas_src>
import math
import functools

import jax
import jax.numpy as jnp
from jax import lax
from jax.experimental import pallas as pl
from jax.experimental.pallas import tpu as pltpu


# ----------------------------------------------------------------------------
# Pallas kernel: fused bidirectional LSTM recurrence for one layer.
# ----------------------------------------------------------------------------
def _bilstm_kernel(gx_ref, whh_ref, out_ref, *, T, B, H):
    """One direction per grid step (grid=(2,), 'parallel').

    gx_ref : (T, B, 4H)  precomputed x @ W_ih^T + b  (time-reversed for d=1)
    whh_ref: (H, 4H)     W_hh^T, gate order (i, f, o, g)
    out_ref: (T, B, H)   hidden states in the kernel's scan order
    """
    whh = whh_ref[...]                       # loop-invariant

    def step(t, carry):
        h, c = carry
        gates = gx_ref[t] + jnp.dot(h, whh, preferred_element_type=jnp.float32)
        sg = jax.nn.sigmoid(gates[:, :3 * H])        # i | f | o  -> one EUP stream
        g = jnp.tanh(gates[:, 3 * H:])
        c_new = sg[:, H:2 * H] * c + sg[:, :H] * g
        h_new = sg[:, 2 * H:3 * H] * jnp.tanh(c_new)
        out_ref[t] = h_new                           # store into resident block
        return h_new, c_new

    zeros = jnp.zeros((B, H), jnp.float32)
    lax.fori_loop(0, T, step, (zeros, zeros), unroll=(T <= 32))


def bilstm_layer(x_tm, wih_t, whh_t, bias):
    """x_tm (T,B,I), wih_t (2,I,4H), whh_t (2,H,4H), bias (2,4H) -> (T,B,2H)."""
    T, B, _ = x_tm.shape
    H = whh_t.shape[1]

    # Input projection hoisted out of the recurrence: one batched matmul per
    # direction.  The backward direction gets its inputs pre-reversed in time
    # so the kernel always scans forward.
    gx_f = jnp.einsum("tbi,ig->tbg", x_tm, wih_t[0]) + bias[0]
    gx_b = jnp.einsum("tbi,ig->tbg", x_tm[::-1], wih_t[1]) + bias[1]
    gx = jnp.stack([gx_f, gx_b], axis=0)              # (2, T, B, 4H)

    out = pl.pallas_call(
        functools.partial(_bilstm_kernel, T=T, B=B, H=H),
        out_shape=jax.ShapeDtypeStruct((2, T, B, H), jnp.float32),
        grid=(2,),
        in_specs=[
            pl.BlockSpec((None, T, B, 4 * H), lambda d: (d, 0, 0, 0)),
            pl.BlockSpec((None, H, 4 * H), lambda d: (d, 0, 0)),
        ],
        out_specs=pl.BlockSpec((None, T, B, H), lambda d: (d, 0, 0, 0)),
        compiler_params=pltpu.CompilerParams(
            dimension_semantics=("parallel",)),        # directions independent
    )(gx, whh_t)

    # Un-reverse the backward direction and lay out as PyTorch's [fwd ++ bwd].
    return jnp.concatenate([out[0], out[1, ::-1]], axis=-1)   # (T, B, 2H)


# ----------------------------------------------------------------------------
# Parameter init (PyTorch layout) and one-time kernel-layout preparation
# ----------------------------------------------------------------------------
def init_params(key, input_size, hidden_size, num_layers, num_classes):
    params = {"lstm": []}
    k_lstm = 1.0 / math.sqrt(hidden_size)
    for layer in range(num_layers):
        in_sz = input_size if layer == 0 else 2 * hidden_size
        dirs = []
        for _ in range(2):  # forward, backward
            key, k1, k2, k3, k4 = jax.random.split(key, 5)
            dirs.append({
                "w_ih": jax.random.uniform(k1, (4 * hidden_size, in_sz),
                                           jnp.float32, -k_lstm, k_lstm),
                "w_hh": jax.random.uniform(k2, (4 * hidden_size, hidden_size),
                                           jnp.float32, -k_lstm, k_lstm),
                "b_ih": jax.random.uniform(k3, (4 * hidden_size,),
                                           jnp.float32, -k_lstm, k_lstm),
                "b_hh": jax.random.uniform(k4, (4 * hidden_size,),
                                           jnp.float32, -k_lstm, k_lstm),
            })
        params["lstm"].append(dirs)
    key, k1, k2 = jax.random.split(key, 3)
    k_fc = 1.0 / math.sqrt(2 * hidden_size)
    params["fc_w"] = jax.random.uniform(k1, (num_classes, 2 * hidden_size),
                                        jnp.float32, -k_fc, k_fc)
    params["fc_b"] = jax.random.uniform(k2, (num_classes,),
                                        jnp.float32, -k_fc, k_fc)
    return params


def _permute_gates(w, H, axis=0):
    """PyTorch gate-block order (i,f,g,o) -> kernel order (i,f,o,g)."""
    i, f, g, o = jnp.split(w, 4, axis=axis)
    return jnp.concatenate([i, f, o, g], axis=axis)


def prepare_params(params, hidden_size):
    """One-time conversion: transpose weights, fuse biases, permute gates, stack dirs."""
    H = hidden_size
    prep = {"layers": []}
    for dirs in params["lstm"]:
        wih_t, whh_t, bias = [], [], []
        for d in dirs:
            wih = _permute_gates(d["w_ih"], H)               # (4H, I)
            whh = _permute_gates(d["w_hh"], H)               # (4H, H)
            b = _permute_gates(d["b_ih"] + d["b_hh"], H)     # (4H,)
            wih_t.append(wih.T)                              # (I, 4H)
            whh_t.append(whh.T)                              # (H, 4H)
            bias.append(b)
        prep["layers"].append({
            "wih_t": jnp.stack(wih_t),                       # (2, I, 4H)
            "whh_t": jnp.stack(whh_t),                       # (2, H, 4H)
            "bias": jnp.stack(bias),                         # (2, 4H)
        })
    prep["fc_w_t"] = params["fc_w"].T                        # (2H, C)
    prep["fc_b"] = params["fc_b"]
    return prep


# ----------------------------------------------------------------------------
# Forward pass
# ----------------------------------------------------------------------------
def _rnn_forward(prep, x):
    """x: (B, T, input_size) -> logits (B, num_classes)."""
    x_tm = jnp.transpose(x, (1, 0, 2)).astype(jnp.float32)   # time-major (T, B, I)
    layer_in = x_tm
    for layer in prep["layers"]:
        layer_in = bilstm_layer(layer_in, layer["wih_t"], layer["whh_t"],
                                layer["bias"])
    last = layer_in[-1]                                      # out[:, -1, :] -> (B, 2H)
    # TODO(synk): nn.Dropout treated as eval-mode identity (stochastic at train time).
    return last @ prep["fc_w_t"] + prep["fc_b"]              # classifier head in XLA


rnn_forward = jax.jit(_rnn_forward)


# ----------------------------------------------------------------------------
# Pure-JAX reference (PyTorch-layout params, PyTorch gate order) for validation
# ----------------------------------------------------------------------------
def _lstm_dir_ref(x_tm, p, reverse):
    T, B, _ = x_tm.shape
    H = p["w_hh"].shape[1]
    xs = x_tm[::-1] if reverse else x_tm

    def step(carry, x_t):
        h, c = carry
        gates = x_t @ p["w_ih"].T + h @ p["w_hh"].T + p["b_ih"] + p["b_hh"]
        i = jax.nn.sigmoid(gates[:, :H])
        f = jax.nn.sigmoid(gates[:, H:2 * H])
        g = jnp.tanh(gates[:, 2 * H:3 * H])
        o = jax.nn.sigmoid(gates[:, 3 * H:])
        c = f * c + i * g
        h = o * jnp.tanh(c)
        return (h, c), h

    init = (jnp.zeros((B, H), jnp.float32), jnp.zeros((B, H), jnp.float32))
    _, hs = jax.lax.scan(step, init, xs)
    return hs[::-1] if reverse else hs


def rnn_forward_ref(params, x):
    x_tm = jnp.transpose(x, (1, 0, 2)).astype(jnp.float32)
    layer_in = x_tm
    for dirs in params["lstm"]:
        out_f = _lstm_dir_ref(layer_in, dirs[0], reverse=False)
        out_b = _lstm_dir_ref(layer_in, dirs[1], reverse=True)
        layer_in = jnp.concatenate([out_f, out_b], axis=-1)
    last = layer_in[-1]
    return last @ params["fc_w"].T + params["fc_b"]


# ----------------------------------------------------------------------------
if __name__ == "__main__":
    config = dict(num_layers=2, hidden_size=32, num_classes=5, dropout=0.1,
                  device="tpu")
    input_size = 16
    batch, seq = 2, 8

    key = jax.random.PRNGKey(0)
    key, kx, kp = jax.random.split(key, 3)

    params = init_params(kp, input_size, config["hidden_size"],
                         config["num_layers"], config["num_classes"])
    prep = prepare_params(params, config["hidden_size"])
    x = jax.random.normal(kx, (batch, seq, input_size), jnp.float32)

    out = jax.block_until_ready(rnn_forward(prep, x))
    ref = jax.block_until_ready(rnn_forward_ref(params, x))

    assert out.shape == (batch, config["num_classes"]), out.shape
    assert jnp.allclose(out, ref, rtol=2e-2, atol=2e-2), (out, ref)

    print("KERNEL_OK")
</pallas_src>

<mosaic_0001>
module attributes {stable_mosaic.version = 11 : i64} {
  func.func @_bilstm_kernel(%arg0: i32, %arg1: memref<1x8x2x128xf32, #tpu.memory_space<vmem>>, %arg2: memref<1x32x128xf32, #tpu.memory_space<vmem>>, %arg3: memref<1x8x2x32xf32, #tpu.memory_space<vmem>>) attributes {dimension_semantics = [#tpu.dimension_semantics<parallel>], iteration_bounds = array<i64: 2>, scalar_prefetch = 0 : i64, scratch_operands = 0 : i64, tpu.core_type = #tpu.core_type<tc>, window_params = [{transform_indices = @transform_0, window_bounds = array<i64: 1, 8, 2, 128>}, {transform_indices = @transform_1, window_bounds = array<i64: 1, 32, 128>}, {transform_indices = @transform_2, window_bounds = array<i64: 1, 8, 2, 32>}]} {
    %c0 = arith.constant 0 : index
    %c0_0 = arith.constant 0 : index
    %c0_1 = arith.constant 0 : index
    %0 = vector.load %arg2[%c0, %c0_0, %c0_1] : memref<1x32x128xf32, #tpu.memory_space<vmem>>, vector<1x32x128xf32>
    %1 = vector.shape_cast %0 : vector<1x32x128xf32> to vector<32x128xf32>
    %cst = arith.constant 0.000000e+00 : f32
    %2 = vector.broadcast %cst : f32 to vector<2x32xf32>
    %c0_i32 = arith.constant 0 : i32
    %c0_2 = arith.constant 0 : index
    %3 = arith.index_cast %c0_i32 : i32 to index
    %c0_3 = arith.constant 0 : index
    %c0_4 = arith.constant 0 : index
    %4 = vector.load %arg1[%c0_2, %3, %c0_3, %c0_4] : memref<1x8x2x128xf32, #tpu.memory_space<vmem>>, vector<1x1x2x128xf32>
    %5 = vector.shape_cast %4 : vector<1x1x2x128xf32> to vector<2x128xf32>
    %cst_5 = arith.constant dense<0.000000e+00> : vector<2x128xf32>
    %6 = tpu.matmul %2, %1, %cst_5 {dimension_numbers = #tpu.dot_dimension_numbers<[1], [0], [0], [1], [0, 0, 1, 1], [], []>} : vector<2x32xf32>, vector<32x128xf32>, vector<2x128xf32> -> vector<2x128xf32>
    %7 = arith.addf %5, %6 : vector<2x128xf32>
    %8 = vector.extract_strided_slice %7 {offsets = [0, 0], sizes = [2, 96], strides = [1, 1]} : vector<2x128xf32> to vector<2x96xf32>
    %9 = arith.negf %8 : vector<2x96xf32>
    %10 = math.exp %9 : vector<2x96xf32>
    %cst_6 = arith.constant 1.000000e+00 : f32
    %11 = vector.broadcast %cst_6 : f32 to vector<2x96xf32>
    %12 = arith.addf %11, %10 : vector<2x96xf32>
    %13 = arith.divf %11, %12 : vector<2x96xf32>
    %14 = vector.extract_strided_slice %7 {offsets = [0, 96], sizes = [2, 32], strides = [1, 1]} : vector<2x128xf32> to vector<2x32xf32>
    %15 = math.tanh %14 : vector<2x32xf32>
    %16 = vector.extract_strided_slice %13 {offsets = [0, 32], sizes = [2, 32], strides = [1, 1]} : vector<2x96xf32> to vector<2x32xf32>
    %17 = arith.mulf %16, %2 : vector<2x32xf32>
    %18 = vector.extract_strided_slice %13 {offsets = [0, 0], sizes = [2, 32], strides = [1, 1]} : vector<2x96xf32> to vector<2x32xf32>
    %19 = arith.mulf %18, %15 : vector<2x32xf32>
    %20 = arith.addf %17, %19 : vector<2x32xf32>
    %21 = vector.extract_strided_slice %13 {offsets = [0, 64], sizes = [2, 32], strides = [1, 1]} : vector<2x96xf32> to vector<2x32xf32>
    %22 = math.tanh %20 : vector<2x32xf32>
    %23 = arith.mulf %21, %22 : vector<2x32xf32>
    %c0_7 = arith.constant 0 : index
    %24 = arith.index_cast %c0_i32 : i32 to index
    %c0_8 = arith.constant 0 : index
    %c0_9 = arith.constant 0 : index
    %25 = vector.load %arg3[%c0_7, %24, %c0_8, %c0_9] : memref<1x8x2x32xf32, #tpu.memory_space<vmem>>, vector<1x1x2x32xf32>
    %26 = vector.shape_cast %25 : vector<1x1x2x32xf32> to vector<2x32xf32>
    %27 = vector.shape_cast %23 : vector<2x32xf32> to vector<1x1x2x32xf32>
    tpu.vector_store %arg3[%c0_7, %24, %c0_8, %c0_9], %27 {strides = array<i32>} : memref<1x8x2x32xf32, #tpu.memory_space<vmem>>, vector<1x1x2x32xf32>,
    %c1_i32 = arith.constant 1 : i32
    %c0_10 = arith.constant 0 : index
    %28 = arith.index_cast %c1_i32 : i32 to index
    %c0_11 = arith.constant 0 : index
    %c0_12 = arith.constant 0 : index
    %29 = vector.load %arg1[%c0_10, %28, %c0_11, %c0_12] : memref<1x8x2x128xf32, #tpu.memory_space<vmem>>, vector<1x1x2x128xf32>
    %30 = vector.shape_cast %29 : vector<1x1x2x128xf32> to vector<2x128xf32>
    %cst_13 = arith.constant dense<0.000000e+00> : vector<2x128xf32>
    %31 = tpu.matmul %23, %1, %cst_13 {dimension_numbers = #tpu.dot_dimension_numbers<[1], [0], [0], [1], [0, 0, 1, 1], [], []>} : vector<2x32xf32>, vector<32x128xf32>, vector<2x128xf32> -> vector<2x128xf32>
    %32 = arith.addf %30, %31 : vector<2x128xf32>
    %33 = vector.extract_strided_slice %32 {offsets = [0, 0], sizes = [2, 96], strides = [1, 1]} : vector<2x128xf32> to vector<2x96xf32>
    %34 = arith.negf %33 : vector<2x96xf32>
    %35 = math.exp %34 : vector<2x96xf32>
    %cst_14 = arith.constant 1.000000e+00 : f32
    %36 = vector.broadcast %cst_14 : f32 to vector<2x96xf32>
    %37 = arith.addf %36, %35 : vector<2x96xf32>
    %38 = arith.divf %36, %37 : vector<2x96xf32>
    %39 = vector.extract_strided_slice %32 {offsets = [0, 96], sizes = [2, 32], strides = [1, 1]} : vector<2x128xf32> to vector<2x32xf32>
    %40 = math.tanh %39 : vector<2x32xf32>
    %41 = vector.extract_strided_slice %38 {offsets = [0, 32], sizes = [2, 32], strides = [1, 1]} : vector<2x96xf32> to vector<2x32xf32>
    %42 = arith.mulf %41, %20 : vector<2x32xf32>
    %43 = vector.extract_strided_slice %38 {offsets = [0, 0], sizes = [2, 32], strides = [1, 1]} : vector<2x96xf32> to vector<2x32xf32>
    %44 = arith.mulf %43, %40 : vector<2x32xf32>
    %45 = arith.addf %42, %44 : vector<2x32xf32>
    %46 = vector.extract_strided_slice %38 {offsets = [0, 64], sizes = [2, 32], strides = [1, 1]} : vector<2x96xf32> to vector<2x32xf32>
    %47 = math.tanh %45 : vector<2x32xf32>
    %48 = arith.mulf %46, %47 : vector<2x32xf32>
    %c0_15 = arith.constant 0 : index
    %49 = arith.index_cast %c1_i32 : i32 to index
    %c0_16 = arith.constant 0 : index
    %c0_17 = arith.constant 0 : index
    %50 = vector.load %arg3[%c0_15, %49, %c0_16, %c0_17] : memref<1x8x2x32xf32, #tpu.memory_space<vmem>>, vector<1x1x2x32xf32>
    %51 = vector.shape_cast %50 : vector<1x1x2x32xf32> to vector<2x32xf32>
    %52 = vector.shape_cast %48 : vector<2x32xf32> to vector<1x1x2x32xf32>
    tpu.vector_store %arg3[%c0_15, %49, %c0_16, %c0_17], %52 {strides = array<i32>} : memref<1x8x2x32xf32, #tpu.memory_space<vmem>>, vector<1x1x2x32xf32>,
    %c2_i32 = arith.constant 2 : i32
    %c0_18 = arith.constant 0 : index
    %53 = arith.index_cast %c2_i32 : i32 to index
    %c0_19 = arith.constant 0 : index
    %c0_20 = arith.constant 0 : index
    %54 = vector.load %arg1[%c0_18, %53, %c0_19, %c0_20] : memref<1x8x2x128xf32, #tpu.memory_space<vmem>>, vector<1x1x2x128xf32>
    %55 = vector.shape_cast %54 : vector<1x1x2x128xf32> to vector<2x128xf32>
    %cst_21 = arith.constant dense<0.000000e+00> : vector<2x128xf32>
    %56 = tpu.matmul %48, %1, %cst_21 {dimension_numbers = #tpu.dot_dimension_numbers<[1], [0], [0], [1], [0, 0, 1, 1], [], []>} : vector<2x32xf32>, vector<32x128xf32>, vector<2x128xf32> -> vector<2x128xf32>
    %57 = arith.addf %55, %56 : vector<2x128xf32>
    %58 = vector.extract_strided_slice %57 {offsets = [0, 0], sizes = [2, 96], strides = [1, 1]} : vector<2x128xf32> to vector<2x96xf32>
    %59 = arith.negf %58 : vector<2x96xf32>
    %60 = math.exp %59 : vector<2x96xf32>
    %cst_22 = arith.constant 1.000000e+00 : f32
    %61 = vector.broadcast %cst_22 : f32 to vector<2x96xf32>
    %62 = arith.addf %61, %60 : vector<2x96xf32>
    %63 = arith.divf %61, %62 : vector<2x96xf32>
    %64 = vector.extract_strided_slice %57 {offsets = [0, 96], sizes = [2, 32], strides = [1, 1]} : vector<2x128xf32> to vector<2x32xf32>
    %65 = math.tanh %64 : vector<2x32xf32>
    %66 = vector.extract_strided_slice %63 {offsets = [0, 32], sizes = [2, 32], strides = [1, 1]} : vector<2x96xf32> to vector<2x32xf32>
    %67 = arith.mulf %66, %45 : vector<2x32xf32>
    %68 = vector.extract_strided_slice %63 {offsets = [0, 0], sizes = [2, 32], strides = [1, 1]} : vector<2x96xf32> to vector<2x32xf32>
    %69 = arith.mulf %68, %65 : vector<2x32xf32>
    %70 = arith.addf %67, %69 : vector<2x32xf32>
    %71 = vector.extract_strided_slice %63 {offsets = [0, 64], sizes = [2, 32], strides = [1, 1]} : vector<2x96xf32> to vector<2x32xf32>
    %72 = math.tanh %70 : vector<2x32xf32>
    %73 = arith.mulf %71, %72 : vector<2x32xf32>
    %c0_23 = arith.constant 0 : index
    %74 = arith.index_cast %c2_i32 : i32 to index
    %c0_24 = arith.constant 0 : index
    %c0_25 = arith.constant 0 : index
    %75 = vector.load %arg3[%c0_23, %74, %c0_24, %c0_25] : memref<1x8x2x32xf32, #tpu.memory_space<vmem>>, vector<1x1x2x32xf32>
    %76 = vector.shape_cast %75 : vector<1x1x2x32xf32> to vector<2x32xf32>
    %77 = vector.shape_cast %73 : vector<2x32xf32> to vector<1x1x2x32xf32>
    tpu.vector_store %arg3[%c0_23, %74, %c0_24, %c0_25], %77 {strides = array<i32>} : memref<1x8x2x32xf32, #tpu.memory_space<vmem>>, vector<1x1x2x32xf32>,
    %c3_i32 = arith.constant 3 : i32
    %c0_26 = arith.constant 0 : index
    %78 = arith.index_cast %c3_i32 : i32 to index
    %c0_27 = arith.constant 0 : index
    %c0_28 = arith.constant 0 : index
    %79 = vector.load %arg1[%c0_26, %78, %c0_27, %c0_28] : memref<1x8x2x128xf32, #tpu.memory_space<vmem>>, vector<1x1x2x128xf32>
    %80 = vector.shape_cast %79 : vector<1x1x2x128xf32> to vector<2x128xf32>
    %cst_29 = arith.constant dense<0.000000e+00> : vector<2x128xf32>
    %81 = tpu.matmul %73, %1, %cst_29 {dimension_numbers = #tpu.dot_dimension_numbers<[1], [0], [0], [1], [0, 0, 1, 1], [], []>} : vector<2x32xf32>, vector<32x128xf32>, vector<2x128xf32> -> vector<2x128xf32>
    %82 = arith.addf %80, %81 : vector<2x128xf32>
    %83 = vector.extract_strided_slice %82 {offsets = [0, 0], sizes = [2, 96], strides = [1, 1]} : vector<2x128xf32> to vector<2x96xf32>
    %84 = arith.negf %83 : vector<2x96xf32>
    %85 = math.exp %84 : vector<2x96xf32>
    %cst_30 = arith.constant 1.000000e+00 : f32
    %86 = vector.broadcast %cst_30 : f32 to vector<2x96xf32>
    %87 = arith.addf %86, %85 : vector<2x96xf32>
    %88 = arith.divf %86, %87 : vector<2x96xf32>
    %89 = vector.extract_strided_slice %82 {offsets = [0, 96], sizes = [2, 32], strides = [1, 1]} : vector<2x128xf32> to vector<2x32xf32>
    %90 = math.tanh %89 : vector<2x32xf32>
    %91 = vector.extract_strided_slice %88 {offsets = [0, 32], sizes = [2, 32], strides = [1, 1]} : vector<2x96xf32> to vector<2x32xf32>
    %92 = arith.mulf %91, %70 : vector<2x32xf32>
    %93 = vector.extract_strided_slice %88 {offsets = [0, 0], sizes = [2, 32], strides = [1, 1]} : vector<2x96xf32> to vector<2x32xf32>
    %94 = arith.mulf %93, %90 : vector<2x32xf32>
    %95 = arith.addf %92, %94 : vector<2x32xf32>
    %96 = vector.extract_strided_slice %88 {offsets = [0, 64], sizes = [2, 32], strides = [1, 1]} : vector<2x96xf32> to vector<2x32xf32>
    %97 = math.tanh %95 : vector<2x32xf32>
    %98 = arith.mulf %96, %97 : vector<2x32xf32>
    %c0_31 = arith.constant 0 : index
    %99 = arith.index_cast %c3_i32 : i32 to index
    %c0_32 = arith.constant 0 : index
    %c0_33 = arith.constant 0 : index
    %100 = vector.load %arg3[%c0_31, %99, %c0_32, %c0_33] : memref<1x8x2x32xf32, #tpu.memory_space<vmem>>, vector<1x1x2x32xf32>
    %101 = vector.shape_cast %100 : vector<1x1x2x32xf32> to vector<2x32xf32>
    %102 = vector.shape_cast %98 : vector<2x32xf32> to vector<1x1x2x32xf32>
    tpu.vector_store %arg3[%c0_31, %99, %c0_32, %c0_33], %102 {strides = array<i32>} : memref<1x8x2x32xf32, #tpu.memory_space<vmem>>, vector<1x1x2x32xf32>,
    %c4_i32 = arith.constant 4 : i32
    %c0_34 = arith.constant 0 : index
    %103 = arith.index_cast %c4_i32 : i32 to index
    %c0_35 = arith.constant 0 : index
    %c0_36 = arith.constant 0 : index
    %104 = vector.load %arg1[%c0_34, %103, %c0_35, %c0_36] : memref<1x8x2x128xf32, #tpu.memory_space<vmem>>, vector<1x1x2x128xf32>
    %105 = vector.shape_cast %104 : vector<1x1x2x128xf32> to vector<2x128xf32>
    %cst_37 = arith.constant dense<0.000000e+00> : vector<2x128xf32>
    %106 = tpu.matmul %98, %1, %cst_37 {dimension_numbers = #tpu.dot_dimension_numbers<[1], [0], [0], [1], [0, 0, 1, 1], [], []>} : vector<2x32xf32>, vector<32x128xf32>, vector<2x128xf32> -> vector<2x128xf32>
    %107 = arith.addf %105, %106 : vector<2x128xf32>
    %108 = vector.extract_strided_slice %107 {offsets = [0, 0], sizes = [2, 96], strides = [1, 1]} : vector<2x128xf32> to vector<2x96xf32>
    %109 = arith.negf %108 : vector<2x96xf32>
    %110 = math.exp %109 : vector<2x96xf32>
    %cst_38 = arith.constant 1.000000e+00 : f32
    %111 = vector.broadcast %cst_38 : f32 to vector<2x96xf32>
    %112 = arith.addf %111, %110 : vector<2x96xf32>
    %113 = arith.divf %111, %112 : vector<2x96xf32>
    %114 = vector.extract_strided_slice %107 {offsets = [0, 96], sizes = [2, 32], strides = [1, 1]} : vector<2x128xf32> to vector<2x32xf32>
    %115 = math.tanh %114 : vector<2x32xf32>
    %116 = vector.extract_strided_slice %113 {offsets = [0, 32], sizes = [2, 32], strides = [1, 1]} : vector<2x96xf32> to vector<2x32xf32>
    %117 = arith.mulf %116, %95 : vector<2x32xf32>
    %118 = vector.extract_strided_slice %113 {offsets = [0, 0], sizes = [2, 32], strides = [1, 1]} : vector<2x96xf32> to vector<2x32xf32>
    %119 = arith.mulf %118, %115 : vector<2x32xf32>
    %120 = arith.addf %117, %119 : vector<2x32xf32>
    %121 = vector.extract_strided_slice %113 {offsets = [0, 64], sizes = [2, 32], strides = [1, 1]} : vector<2x96xf32> to vector<2x32xf32>
    %122 = math.tanh %120 : vector<2x32xf32>
    %123 = arith.mulf %121, %122 : vector<2x32xf32>
    %c0_39 = arith.constant 0 : index
    %124 = arith.index_cast %c4_i32 : i32 to index
    %c0_40 = arith.constant 0 : index
    %c0_41 = arith.constant 0 : index
    %125 = vector.load %arg3[%c0_39, %124, %c0_40, %c0_41] : memref<1x8x2x32xf32, #tpu.memory_space<vmem>>, vector<1x1x2x32xf32>
    %126 = vector.shape_cast %125 : vector<1x1x2x32xf32> to vector<2x32xf32>
    %127 = vector.shape_cast %123 : vector<2x32xf32> to vector<1x1x2x32xf32>
    tpu.vector_store %arg3[%c0_39, %124, %c0_40, %c0_41], %127 {strides = array<i32>} : memref<1x8x2x32xf32, #tpu.memory_space<vmem>>, vector<1x1x2x32xf32>,
    %c5_i32 = arith.constant 5 : i32
    %c0_42 = arith.constant 0 : index
    %128 = arith.index_cast %c5_i32 : i32 to index
    %c0_43 = arith.constant 0 : index
    %c0_44 = arith.constant 0 : index
    %129 = vector.load %arg1[%c0_42, %128, %c0_43, %c0_44] : memref<1x8x2x128xf32, #tpu.memory_space<vmem>>, vector<1x1x2x128xf32>
    %130 = vector.shape_cast %129 : vector<1x1x2x128xf32> to vector<2x128xf32>
    %cst_45 = arith.constant dense<0.000000e+00> : vector<2x128xf32>
    %131 = tpu.matmul %123, %1, %cst_45 {dimension_numbers = #tpu.dot_dimension_numbers<[1], [0], [0], [1], [0, 0, 1, 1], [], []>} : vector<2x32xf32>, vector<32x128xf32>, vector<2x128xf32> -> vector<2x128xf32>
    %132 = arith.addf %130, %131 : vector<2x128xf32>
    %133 = vector.extract_strided_slice %132 {offsets = [0, 0], sizes = [2, 96], strides = [1, 1]} : vector<2x128xf32> to vector<2x96xf32>
    %134 = arith.negf %133 : vector<2x96xf32>
    %135 = math.exp %134 : vector<2x96xf32>
    %cst_46 = arith.constant 1.000000e+00 : f32
    %136 = vector.broadcast %cst_46 : f32 to vector<2x96xf32>
    %137 = arith.addf %136, %135 : vector<2x96xf32>
    %138 = arith.divf %136, %137 : vector<2x96xf32>
    %139 = vector.extract_strided_slice %132 {offsets = [0, 96], sizes = [2, 32], strides = [1, 1]} : vector<2x128xf32> to vector<2x32xf32>
    %140 = math.tanh %139 : vector<2x32xf32>
    %141 = vector.extract_strided_slice %138 {offsets = [0, 32], sizes = [2, 32], strides = [1, 1]} : vector<2x96xf32> to vector<2x32xf32>
    %142 = arith.mulf %141, %120 : vector<2x32xf32>
    %143 = vector.extract_strided_slice %138 {offsets = [0, 0], sizes = [2, 32], strides = [1, 1]} : vector<2x96xf32> to vector<2x32xf32>
    %144 = arith.mulf %143, %140 : vector<2x32xf32>
    %145 = arith.addf %142, %144 : vector<2x32xf32>
    %146 = vector.extract_strided_slice %138 {offsets = [0, 64], sizes = [2, 32], strides = [1, 1]} : vector<2x96xf32> to vector<2x32xf32>
    %147 = math.tanh %145 : vector<2x32xf32>
    %148 = arith.mulf %146, %147 : vector<2x32xf32>
    %c0_47 = arith.constant 0 : index
    %149 = arith.index_cast %c5_i32 : i32 to index
    %c0_48 = arith.constant 0 : index
    %c0_49 = arith.constant 0 : index
    %150 = vector.load %arg3[%c0_47, %149, %c0_48, %c0_49] : memref<1x8x2x32xf32, #tpu.memory_space<vmem>>, vector<1x1x2x32xf32>
    %151 = vector.shape_cast %150 : vector<1x1x2x32xf32> to vector<2x32xf32>
    %152 = vector.shape_cast %148 : vector<2x32xf32> to vector<1x1x2x32xf32>
    tpu.vector_store %arg3[%c0_47, %149, %c0_48, %c0_49], %152 {strides = array<i32>} : memref<1x8x2x32xf32, #tpu.memory_space<vmem>>, vector<1x1x2x32xf32>,
    %c6_i32 = arith.constant 6 : i32
    %c0_50 = arith.constant 0 : index
    %153 = arith.index_cast %c6_i32 : i32 to index
    %c0_51 = arith.constant 0 : index
    %c0_52 = arith.constant 0 : index
    %154 = vector.load %arg1[%c0_50, %153, %c0_51, %c0_52] : memref<1x8x2x128xf32, #tpu.memory_space<vmem>>, vector<1x1x2x128xf32>
    %155 = vector.shape_cast %154 : vector<1x1x2x128xf32> to vector<2x128xf32>
    %cst_53 = arith.constant dense<0.000000e+00> : vector<2x128xf32>
    %156 = tpu.matmul %148, %1, %cst_53 {dimension_numbers = #tpu.dot_dimension_numbers<[1], [0], [0], [1], [0, 0, 1, 1], [], []>} : vector<2x32xf32>, vector<32x128xf32>, vector<2x128xf32> -> vector<2x128xf32>
    %157 = arith.addf %155, %156 : vector<2x128xf32>
    %158 = vector.extract_strided_slice %157 {offsets = [0, 0], sizes = [2, 96], strides = [1, 1]} : vector<2x128xf32> to vector<2x96xf32>
    %159 = arith.negf %158 : vector<2x96xf32>
    %160 = math.exp %159 : vector<2x96xf32>
    %cst_54 = arith.constant 1.000000e+00 : f32
    %161 = vector.broadcast %cst_54 : f32 to vector<2x96xf32>
    %162 = arith.addf %161, %160 : vector<2x96xf32>
    %163 = arith.divf %161, %162 : vector<2x96xf32>
    %164 = vector.extract_strided_slice %157 {offsets = [0, 96], sizes = [2, 32], strides = [1, 1]} : vector<2x128xf32> to vector<2x32xf32>
    %165 = math.tanh %164 : vector<2x32xf32>
    %166 = vector.extract_strided_slice %163 {offsets = [0, 32], sizes = [2, 32], strides = [1, 1]} : vector<2x96xf32> to vector<2x32xf32>
    %167 = arith.mulf %166, %145 : vector<2x32xf32>
    %168 = vector.extract_strided_slice %163 {offsets = [0, 0], sizes = [2, 32], strides = [1, 1]} : vector<2x96xf32> to vector<2x32xf32>
    %169 = arith.mulf %168, %165 : vector<2x32xf32>
    %170 = arith.addf %167, %169 : vector<2x32xf32>
    %171 = vector.extract_strided_slice %163 {offsets = [0, 64], sizes = [2, 32], strides = [1, 1]} : vector<2x96xf32> to vector<2x32xf32>
    %172 = math.tanh %170 : vector<2x32xf32>
    %173 = arith.mulf %171, %172 : vector<2x32xf32>
    %c0_55 = arith.constant 0 : index
    %174 = arith.index_cast %c6_i32 : i32 to index
    %c0_56 = arith.constant 0 : index
    %c0_57 = arith.constant 0 : index
    %175 = vector.load %arg3[%c0_55, %174, %c0_56, %c0_57] : memref<1x8x2x32xf32, #tpu.memory_space<vmem>>, vector<1x1x2x32xf32>
    %176 = vector.shape_cast %175 : vector<1x1x2x32xf32> to vector<2x32xf32>
    %177 = vector.shape_cast %173 : vector<2x32xf32> to vector<1x1x2x32xf32>
    tpu.vector_store %arg3[%c0_55, %174, %c0_56, %c0_57], %177 {strides = array<i32>} : memref<1x8x2x32xf32, #tpu.memory_space<vmem>>, vector<1x1x2x32xf32>,
    %c7_i32 = arith.constant 7 : i32
    %c0_58 = arith.constant 0 : index
    %178 = arith.index_cast %c7_i32 : i32 to index
    %c0_59 = arith.constant 0 : index
    %c0_60 = arith.constant 0 : index
    %179 = vector.load %arg1[%c0_58, %178, %c0_59, %c0_60] : memref<1x8x2x128xf32, #tpu.memory_space<vmem>>, vector<1x1x2x128xf32>
    %180 = vector.shape_cast %179 : vector<1x1x2x128xf32> to vector<2x128xf32>
    %cst_61 = arith.constant dense<0.000000e+00> : vector<2x128xf32>
    %181 = tpu.matmul %173, %1, %cst_61 {dimension_numbers = #tpu.dot_dimension_numbers<[1], [0], [0], [1], [0, 0, 1, 1], [], []>} : vector<2x32xf32>, vector<32x128xf32>, vector<2x128xf32> -> vector<2x128xf32>
    %182 = arith.addf %180, %181 : vector<2x128xf32>
    %183 = vector.extract_strided_slice %182 {offsets = [0, 0], sizes = [2, 96], strides = [1, 1]} : vector<2x128xf32> to vector<2x96xf32>
    %184 = arith.negf %183 : vector<2x96xf32>
    %185 = math.exp %184 : vector<2x96xf32>
    %cst_62 = arith.constant 1.000000e+00 : f32
    %186 = vector.broadcast %cst_62 : f32 to vector<2x96xf32>
    %187 = arith.addf %186, %185 : vector<2x96xf32>
    %188 = arith.divf %186, %187 : vector<2x96xf32>
    %189 = vector.extract_strided_slice %182 {offsets = [0, 96], sizes = [2, 32], strides = [1, 1]} : vector<2x128xf32> to vector<2x32xf32>
    %190 = math.tanh %189 : vector<2x32xf32>
    %191 = vector.extract_strided_slice %188 {offsets = [0, 32], sizes = [2, 32], strides = [1, 1]} : vector<2x96xf32> to vector<2x32xf32>
    %192 = arith.mulf %191, %170 : vector<2x32xf32>
    %193 = vector.extract_strided_slice %188 {offsets = [0, 0], sizes = [2, 32], strides = [1, 1]} : vector<2x96xf32> to vector<2x32xf32>
    %194 = arith.mulf %193, %190 : vector<2x32xf32>
    %195 = arith.addf %192, %194 : vector<2x32xf32>
    %196 = vector.extract_strided_slice %188 {offsets = [0, 64], sizes = [2, 32], strides = [1, 1]} : vector<2x96xf32> to vector<2x32xf32>
    %197 = math.tanh %195 : vector<2x32xf32>
    %198 = arith.mulf %196, %197 : vector<2x32xf32>
    %c0_63 = arith.constant 0 : index
    %199 = arith.index_cast %c7_i32 : i32 to index
    %c0_64 = arith.constant 0 : index
    %c0_65 = arith.constant 0 : index
    %200 = vector.load %arg3[%c0_63, %199, %c0_64, %c0_65] : memref<1x8x2x32xf32, #tpu.memory_space<vmem>>, vector<1x1x2x32xf32>
    %201 = vector.shape_cast %200 : vector<1x1x2x32xf32> to vector<2x32xf32>
    %202 = vector.shape_cast %198 : vector<2x32xf32> to vector<1x1x2x32xf32>
    tpu.vector_store %arg3[%c0_63, %199, %c0_64, %c0_65], %202 {strides = array<i32>} : memref<1x8x2x32xf32, #tpu.memory_space<vmem>>, vector<1x1x2x32xf32>,
    %c8_i32 = arith.constant 8 : i32
    return
  }
  func.func @transform_0(%arg0: i32) -> (i32, i32, i32, i32) {
    %c0_i32 = arith.constant 0 : i32
    %c0_i32_0 = arith.constant 0 : i32
    %c0_i32_1 = arith.constant 0 : i32
    %c0_i32_2 = arith.constant 0 : i32
    return %arg0, %c0_i32, %c0_i32_0, %c0_i32_1 : i32, i32, i32, i32
  }
  func.func @transform_1(%arg0: i32) -> (i32, i32, i32) {
    %c0_i32 = arith.constant 0 : i32
    %c0_i32_0 = arith.constant 0 : i32
    %c0_i32_1 = arith.constant 0 : i32
    return %arg0, %c0_i32, %c0_i32_0 : i32, i32, i32
  }
  func.func @transform_2(%arg0: i32) -> (i32, i32, i32, i32) {
    %c0_i32 = arith.constant 0 : i32
    %c0_i32_0 = arith.constant 0 : i32
    %c0_i32_1 = arith.constant 0 : i32
    %c0_i32_2 = arith.constant 0 : i32
    return %arg0, %c0_i32, %c0_i32_0, %c0_i32_1 : i32, i32, i32, i32
  }
}

</mosaic_0001>

<llo_original>
// kernel: _rnn_forward.2
$region0: #{_rnn_forward.2}
  #allocation0 [shape = 'u32[]', space=smem, size = 0x4, offset = 0x4, fixed_abs, tag = 'smem constant byte address 0x4 - core index']
  #allocation1 [shape = 'u32[144,128]{1,0:T(1,128)}', space=vmem, size = 0x12000, scoped, tag = 'internal scratch']
  %s0 = inlined_call_operand.vmem [shape: f32[2,8,2,128], index: 0, kind: input, shape index: {}]
  %s1 = inlined_call_operand.vmem [shape: f32[2,32,128], index: 1, kind: input, shape index: {}]
  %s2 = inlined_call_operand.vmem [shape: f32[2,8,2,32], index: 2, kind: output, shape index: {}]
  %s3 = sld [smem:[#allocation0]]
  $region41: #{_rnn_forward.2} parent=0
    _
  %s5 = ssub.s32 1, %s3
  %s6 = scalar_select 0, %s5, %s3
  loop: start=0, step=1, limit=4
  $region2: #{_rnn_forward.2} parent=0 // loop_pre_header
    _
  $region3: #{_rnn_forward.2} parent=0 // loop_header
    %s8 = sphi 0, %s12
    %p9 = scmp.ge.s32.totalorder %s8, 4
    %s18 = sphi 0, %s20
    %s21 = sphi 0, %s18
    %s22 = sphi 0, %s21
    %s38 = sphi 0, %s22
    %s44 = sphi 0, %s46
    %s47 = sphi 0, %s44
    %s48 = sphi 0, %s47
    %s64 = sphi 0, %s48
    %s70 = sphi 0, %s72
    %s73 = sphi 0, %s70
    %s74 = sphi 0, %s73
    %s90 = sphi 0, %s74
  $region4: #{_rnn_forward.2} parent=0 // loop_header_branch
    %11 = sbr.rel (%p9) target = $region8
  $region5: #{_rnn_forward.2} parent=0 // loop_body
    %s13 = ssub.s32 %s8, 1
    %s14 = ssub.s32 %s8, 2
    %s15 = sadd.s32 %s8, 1
    %s16 = ssub.s32 %s8, %s15
    %p17 = scmp.eq.s32.totalorder %s16, 0
    %s19 = sadd.s32 %s18, 1
    %s20 = scalar_select %p17, %s18, %s19
    %p23 = pneg %p17
    %p24 = scmp.eq.s32.totalorder %s8, 1
    %p25 = por %p23, %p24
    %p26 = scmp.ne.s32.totalorder %s18, %s21
    %p27 = scmp.eq.s32.totalorder %s8, 0
    %p28 = por %p26, %p27
    %p29 = scmp.ne.s32.totalorder %s18, %s21
    %p30 = scmp.eq.s32.totalorder %s13, 1
    %p31 = por %p29, %p30
    %p32 = scmp.ne.s32.totalorder %s21, %s22
    %p33 = scmp.eq.s32.totalorder %s13, 0
    %p34 = por %p32, %p33
    %p35 = scmp.ne.s32.totalorder %s21, %s22
    %p36 = scmp.eq.s32.totalorder %s14, 1
    %p37 = por %p35, %p36
    %p39 = scmp.ne.s32.totalorder %s22, %s38
    %p40 = scmp.eq.s32.totalorder %s14, 0
    %p41 = por %p39, %p40
    %s42 = ssub.s32 %s8, %s15
    %p43 = scmp.eq.s32.totalorder %s42, 0
    %s45 = sadd.s32 %s44, 1
    %s46 = scalar_select %p43, %s44, %s45
    %p49 = pneg %p43
    %p50 = scmp.eq.s32.totalorder %s8, 1
    %p51 = por %p49, %p50
    %p52 = scmp.ne.s32.totalorder %s44, %s47
    %p53 = scmp.eq.s32.totalorder %s8, 0
    %p54 = por %p52, %p53
    %p55 = scmp.ne.s32.totalorder %s44, %s47
    %p56 = scmp.eq.s32.totalorder %s13, 1
    %p57 = por %p55, %p56
    %p58 = scmp.ne.s32.totalorder %s47, %s48
    %p59 = scmp.eq.s32.totalorder %s13, 0
    %p60 = por %p58, %p59
    %p61 = scmp.ne.s32.totalorder %s47, %s48
    %p62 = scmp.eq.s32.totalorder %s14, 1
    %p63 = por %p61, %p62
    %p65 = scmp.ne.s32.totalorder %s48, %s64
    %p66 = scmp.eq.s32.totalorder %s14, 0
    %p67 = por %p65, %p66
    %s68 = ssub.s32 %s8, %s15
    %p69 = scmp.eq.s32.totalorder %s68, 0
    %s71 = sadd.s32 %s70, 1
    %s72 = scalar_select %p69, %s70, %s71
    %p75 = pneg %p69
    %p76 = scmp.eq.s32.totalorder %s8, 1
    %p77 = por %p75, %p76
    %p78 = scmp.ne.s32.totalorder %s70, %s73
    %p79 = scmp.eq.s32.totalorder %s8, 0
    %p80 = por %p78, %p79
    %p81 = scmp.ne.s32.totalorder %s70, %s73
    %p82 = scmp.eq.s32.totalorder %s13, 1
    %p83 = por %p81, %p82
    %p84 = scmp.ne.s32.totalorder %s73, %s74
    %p85 = scmp.eq.s32.totalorder %s13, 0
    %p86 = por %p84, %p85
    %p87 = scmp.ne.s32.totalorder %s73, %s74
    %p88 = scmp.eq.s32.totalorder %s14, 1
    %p89 = por %p87, %p88
    %p91 = scmp.ne.s32.totalorder %s74, %s90
    %p92 = scmp.eq.s32.totalorder %s14, 0
    %p93 = por %p91, %p92
    %p94 = scmp.le.s32.totalorder 1, %s8
    %p95 = scmp.lt.s32.totalorder %s8, 3
    %p96 = pnand %p94, %p95
    %p97 = pneg %p96
    // Predicated region
    $region9: #{_rnn_forward.2} parent=5 // pred_check
      _
    $region10: #{_rnn_forward.2} parent=5 // pred_check_branch
      %99 = sbr.rel (%p96) target = $region12
    $region11: #{_rnn_forward.2} parent=5 // pred_region
      %s100 = ssub.s32 %s8, 1
    $region12: #{_rnn_forward.2} parent=5 // pred_fallthru
      _
    %p101 = scmp.lt.s32.totalorder %s8, 2
    // Predicated region
    $region13: #{_rnn_forward.2} parent=5 // pred_check
      %p102 = pneg %p101
    $region14: #{_rnn_forward.2} parent=5 // pred_check_branch
      %104 = sbr.rel (%p102) target = $region16
    $region15: #{_rnn_forward.2} parent=5 // pred_region
      // Predicated region
      $region17: #{_rnn_forward.2} parent=15 // pred_check
        %p105 = pneg %p28
      $region18: #{_rnn_forward.2} parent=15 // pred_check_branch
        %107 = sbr.rel (%p105) target = $region20
      $region19: #{_rnn_forward.2} parent=15 // pred_region
        %p108 = scmp.lt.s32.totalorder %s8, 1
        %s109 = scalar_select %p108, %s8, 1
        %s110 = smul.addr %s109, 8
        %s111 = smul.addr %s110, 2
        %s112 = scalar_lea.vmem %s0, %s111
      $region20: #{_rnn_forward.2} parent=15 // pred_fallthru
        _
      // Predicated region
      $region21: #{_rnn_forward.2} parent=15 // pred_check
        %p113 = pneg %p54
      $region22: #{_rnn_forward.2} parent=15 // pred_check_branch
        %115 = sbr.rel (%p113) target = $region24
      $region23: #{_rnn_forward.2} parent=15 // pred_region
        %p116 = scmp.lt.s32.totalorder %s8, 1
        %s117 = scalar_select %p116, %s8, 1
        %s118 = smul.addr %s117, 4
        %s119 = smul.addr %s118, 8
        %s120 = scalar_lea.vmem %s1, %s119
      $region24: #{_rnn_forward.2} parent=15 // pred_fallthru
        _
    $region16: #{_rnn_forward.2} parent=5 // pred_fallthru
      _
    %p121 = scmp.le.s32.totalorder 1, %s8
    %p122 = scmp.lt.s32.totalorder %s8, 3
    %p123 = pnand %p121, %p122
    %p124 = pneg %p123
    // Predicated region
    $region25: #{_rnn_forward.2} parent=5 // pred_check
      _
    $region26: #{_rnn_forward.2} parent=5 // pred_check_branch
      %126 = sbr.rel (%p123) target = $region28
    $region27: #{_rnn_forward.2} parent=5 // pred_region
      %s127 = ssub.s32 %s8, 1
      %p128 = scmp.lt.s32.totalorder %s13, 1
      %s129 = scalar_select %p128, %s13, 1
      %s130 = smul.addr %s129, 8
      %s131 = smul.addr %s130, 2
      %s132 = scalar_lea.vmem %s0, %s131
      %p133 = pneg %p34
      %p134 = pneg %p31
      %p135 = scmp.lt.s32.totalorder %s13, 1
      %s136 = scalar_select %p135, %s13, 1
      %s137 = smul.addr %s136, 4
      %s138 = smul.addr %s137, 8
      %s139 = scalar_lea.vmem %s1, %s138
      %p140 = pneg %p60
      %p141 = pneg %p57
      %p142 = pneg %p86
      %p143 = pneg %p83
      %p144 = scmp.lt.s32.totalorder %s13, 1
      %s145 = scalar_select %p144, %s13, 1
      %s146 = smul.addr %s145, 8
      %s147 = smul.addr %s146, 2
      %s148 = scalar_lea.vmem %s2, %s147
      %p149 = scmp.lt.s32.totalorder %s13, 1
      %s150 = scalar_select %p149, %s13, 1
      %s151 = smul.addr %s150, 8
      %s152 = smul.addr %s151, 2
      %s153 = scalar_lea.vmem %s0, %s152
      %p154 = scmp.lt.s32.totalorder %s13, 1
      %s155 = scalar_select %p154, %s13, 1
      %s156 = smul.addr %s155, 4
      %s157 = smul.addr %s156, 8
      %s158 = scalar_lea.vmem %s1, %s157
      %p159 = scmp.lt.s32.totalorder %s13, 1
      %s160 = scalar_select %p159, %s13, 1
      %s161 = smul.addr %s160, 8
      %s162 = smul.addr %s161, 2
      %s163 = scalar_lea.vmem %s2, %s162
      %v164 = vld [vmem:[%s158] sm:$0xff]
      %v165 = vld [vmem:[%s158 + $0x8] sm:$0xff]
      %v166 = vld [vmem:[%s158 + $0x10] sm:$0xff]
      %v167 = vld [vmem:[%s158 + $0x18] sm:$0xff]
      %v168 = vld [vmem:[%s153] sm:$0x3]
      %vm169 = vcmask 261120
      %v171 = vsel %vm169, 0.0, 0
      %173 = vmatprep.subr.mxu0 0.0
      %174 = vmatpush1.msra.mxu0 0.0
      %175 = vmatprep.subr.mxu0 0.0
      %176 = vmatpush1.msra.mxu0 0.0
      %177 = vmatprep.subr.mxu0 0.0
      %178 = vmatpush1.msra.mxu0 0.0
      %179 = vmatprep.subr.mxu0 0.0
      %180 = vmatpush1.msra.mxu0 0.0
      %181 = vmatprep.subr.mxu0 0.0
      %182 = vmatpush1.msra.mxu0 0.0
      %183 = vmatprep.subr.mxu0 0.0
      %184 = vmatpush1.msra.mxu0 0.0
      %185 = vmatprep.subr.mxu0 0.0
      %186 = vmatpush1.msra.mxu0 0.0
      %187 = vmatprep.subr.mxu0 0.0
      %188 = vmatpush1.msra.mxu0 0.0
      %189 = vmatprep.subr.mxu0 0.0
      %190 = vmatpush1.msra.mxu0 0.0
      %191 = vmatprep.subr.mxu0 0.0
      %192 = vmatpush1.msra.mxu0 0.0
      %193 = vmatprep.subr.mxu0 0.0
      %194 = vmatpush1.msra.mxu0 0.0
      %195 = vmatprep.subr.mxu0 0.0
      %196 = vmatpush1.msra.mxu0 0.0
      %197 = vmatprep.subr.mxu0 0.0
      %198 = vmatpush1.msra.mxu0 %v167
      %199 = vmatprep.subr.mxu0 0.0
      %200 = vmatpush1.msra.mxu0 %v166
      %201 = vmatprep.subr.mxu0 0.0
      %202 = vmatpush1.msra.mxu0 %v165
      %203 = vmatprep.subr.mxu0 0.0
      %204 = vmatpush1.msra.mxu0 %v164
      %205 = vmatprep.subr.mxu0 0.0
      %206 = vmatpush2.msra.mxu0 0.0
      %207 = vmatprep.subr.mxu0 0.0
      %208 = vmatpush2.msra.mxu0 0.0
      %209 = vmatprep.subr.mxu0 0.0
      %210 = vmatpush2.msra.mxu0 0.0
      %211 = vmatprep.subr.mxu0 0.0
      %212 = vmatpush2.msra.mxu0 0.0
      %213 = vmatprep.subr.mxu0 0.0
      %214 = vmatpush2.msra.mxu0 0.0
      %215 = vmatprep.subr.mxu0 0.0
      %216 = vmatpush2.msra.mxu0 0.0
      %217 = vmatprep.subr.mxu0 0.0
      %218 = vmatpush2.msra.mxu0 0.0
      %219 = vmatprep.subr.mxu0 0.0
      %220 = vmatpush2.msra.mxu0 0.0
      %221 = vmatprep.subr.mxu0 0.0
      %222 = vmatpush2.msra.mxu0 0.0
      %223 = vmatprep.subr.mxu0 0.0
      %224 = vmatpush2.msra.mxu0 0.0
      %225 = vmatprep.subr.mxu0 0.0
      %226 = vmatpush2.msra.mxu0 0.0
      %227 = vmatprep.subr.mxu0 0.0
      %228 = vmatpush2.msra.mxu0 0.0
      %229 = vmatprep.subr.mxu0 0.0
      %230 = vmatpush2.msra.mxu0 0.0
      %231 = vmatprep.subr.mxu0 0.0
      %232 = vmatpush2.msra.mxu0 0.0
      %233 = vmatprep.subr.mxu0 0.0
      %234 = vmatpush2.msra.mxu0 0.0
      %235 = vmatprep.subr.mxu0 0.0
      %236 = vmatpush2.msra.mxu0 0.0
      %237 = vmatprep.mubr.f32.mxu0 0.0
      %238 = vmatmul.mubr.f32.gmra.mxu0 %v171
      %v239 = vpop.f32.mrf.mxu0
      %v240 = vadd.f32 0.0, %v239
      %v241 = vpop.f32.mrf.mxu0
      %242 = vdwg.mxu0
      %v243 = vadd.f32 %v168, %v240
      %v244 = vxor.u32 %v243, 2147483648
      %v245 = vmul.f32 %v244, 1.442695
      %v246 = vpow.pop %v245
      %v247 = vadd.f32 %v246, 1.0
      %v248 = vrcp.pop %v247
      %v249 = vmul.f32 1.0, %v248
      %v250 = vtanh.pop %v243
      %v251 = vmul.f32 %v249, 0.0
      %253 = vrot.lane.b32.xlu0 %v250, 32
      %v254 = vpop.permute.xlu0 %253
      %v256 = vmul.f32 %v249, %v254
      %258 = vrot.lane.b32.xlu0 %v256, 32
      %v259 = vpop.permute.xlu0 %258
      %v261 = vadd.f32 %v251, %v259
      %v262 = vtanh.pop %v261
      %264 = vrot.lane.b32.xlu0 %v262, 32
      %v265 = vpop.permute.xlu0 %264
      %v267 = vmul.f32 %v249, %v265
      %269 = vrot.lane.b32.xlu0 %v267, 64
      %v270 = vpop.permute.xlu0 %269
      %vm272 = vcmask 254976
      %273 = vst.msk [vmem:[%s163] sm:$0x3] %vm272, %v270
      %s274 = scalar_lea.vmem %s153, 2
      %v275 = vld [vmem:[%s274] sm:$0x3]
      %v276 = vsel %vm169, %v270, 0
      %278 = vmatprep.subr.mxu0 0.0
      %279 = vmatpush1.msra.mxu0 0.0
      %280 = vmatprep.subr.mxu0 0.0
      %281 = vmatpush1.msra.mxu0 0.0
      %282 = vmatprep.subr.mxu0 0.0
      %283 = vmatpush1.msra.mxu0 0.0
      %284 = vmatprep.subr.mxu0 0.0
      %285 = vmatpush1.msra.mxu0 0.0
      %286 = vmatprep.subr.mxu0 0.0
      %287 = vmatpush1.msra.mxu0 0.0
      %288 = vmatprep.subr.mxu0 0.0
      %289 = vmatpush1.msra.mxu0 0.0
      %290 = vmatprep.subr.mxu0 0.0
      %291 = vmatpush1.msra.mxu0 0.0
      %292 = vmatprep.subr.mxu0 0.0
      %293 = vmatpush1.msra.mxu0 0.0
      %294 = vmatprep.subr.mxu0 0.0
      %295 = vmatpush1.msra.mxu0 0.0
      %296 = vmatprep.subr.mxu0 0.0
      %297 = vmatpush1.msra.mxu0 0.0
      %298 = vmatprep.subr.mxu0 0.0
      %299 = vmatpush1.msra.mxu0 0.0
      %300 = vmatprep.subr.mxu0 0.0
      %301 = vmatpush1.msra.mxu0 0.0
      %302 = vmatprep.subr.mxu0 0.0
      %303 = vmatpush1.msra.mxu0 %v167
      %304 = vmatprep.subr.mxu0 0.0
      %305 = vmatpush1.msra.mxu0 %v166
      %306 = vmatprep.subr.mxu0 0.0
      %307 = vmatpush1.msra.mxu0 %v165
      %308 = vmatprep.subr.mxu0 0.0
      %309 = vmatpush1.msra.mxu0 %v164
      %310 = vmatprep.subr.mxu0 0.0
      %311 = vmatpush2.msra.mxu0 0.0
      %312 = vmatprep.subr.mxu0 0.0
      %313 = vmatpush2.msra.mxu0 0.0
      %314 = vmatprep.subr.mxu0 0.0
      %315 = vmatpush2.msra.mxu0 0.0
      %316 = vmatprep.subr.mxu0 0.0
      %317 = vmatpush2.msra.mxu0 0.0
      %318 = vmatprep.subr.mxu0 0.0
      %319 = vmatpush2.msra.mxu0 0.0
      %320 = vmatprep.subr.mxu0 0.0
      %321 = vmatpush2.msra.mxu0 0.0
      %322 = vmatprep.subr.mxu0 0.0
      %323 = vmatpush2.msra.mxu0 0.0
      %324 = vmatprep.subr.mxu0 0.0
      %325 = vmatpush2.msra.mxu0 0.0
      %326 = vmatprep.subr.mxu0 0.0
      %327 = vmatpush2.msra.mxu0 0.0
      %328 = vmatprep.subr.mxu0 0.0
      %329 = vmatpush2.msra.mxu0 0.0
      %330 = vmatprep.subr.mxu0 0.0
      %331 = vmatpush2.msra.mxu0 0.0
      %332 = vmatprep.subr.mxu0 0.0
      %333 = vmatpush2.msra.mxu0 0.0
      %334 = vmatprep.subr.mxu0 0.0
      %335 = vmatpush2.msra.mxu0 0.0
      %336 = vmatprep.subr.mxu0 0.0
      %337 = vmatpush2.msra.mxu0 0.0
      %338 = vmatprep.subr.mxu0 0.0
      %339 = vmatpush2.msra.mxu0 0.0
      %340 = vmatprep.subr.mxu0 0.0
      %341 = vmatpush2.msra.mxu0 0.0
      %342 = vmatprep.mubr.f32.mxu0 0.0
      %343 = vmatmul.mubr.f32.gmra.mxu0 %v276
      %v344 = vpop.f32.mrf.mxu0
      %v345 = vadd.f32 0.0, %v344
      %v346 = vpop.f32.mrf.mxu0
      %347 = vdwg.mxu0
      %v348 = vadd.f32 %v275, %v345
      %v349 = vxor.u32 %v348, 2147483648
      %v350 = vmul.f32 %v349, 1.442695
      %v351 = vpow.pop %v350
      %v352 = vadd.f32 %v351, 1.0
      %v353 = vrcp.pop %v352
      %v354 = vmul.f32 1.0, %v353
      %v355 = vtanh.pop %v348
      %v356 = vmul.f32 %v354, %v261
      %358 = vrot.lane.b32.xlu0 %v355, 32
      %v359 = vpop.permute.xlu0 %358
      %v361 = vmul.f32 %v354, %v359
      %363 = vrot.lane.b32.xlu0 %v361, 32
      %v364 = vpop.permute.xlu0 %363
      %v366 = vadd.f32 %v356, %v364
      %v367 = vtanh.pop %v366
      %369 = vrot.lane.b32.xlu0 %v367, 32
      %v370 = vpop.permute.xlu0 %369
      %v372 = vmul.f32 %v354, %v370
      %374 = vrot.lane.b32.xlu0 %v372, 64
      %v375 = vpop.permute.xlu0 %374
      %s377 = scalar_lea.vmem %s163, 2
      %378 = vst.msk [vmem:[%s377] sm:$0x3] %vm272, %v375
      %s379 = scalar_lea.vmem %s153, 4
      %v380 = vld [vmem:[%s379] sm:$0x3]
      %v381 = vsel %vm169, %v375, 0
      %383 = vmatprep.subr.mxu0 0.0
      %384 = vmatpush1.msra.mxu0 0.0
      %385 = vmatprep.subr.mxu0 0.0
      %386 = vmatpush1.msra.mxu0 0.0
      %387 = vmatprep.subr.mxu0 0.0
      %388 = vmatpush1.msra.mxu0 0.0
      %389 = vmatprep.subr.mxu0 0.0
      %390 = vmatpush1.msra.mxu0 0.0
      %391 = vmatprep.subr.mxu0 0.0
      %392 = vmatpush1.msra.mxu0 0.0
      %393 = vmatprep.subr.mxu0 0.0
      %394 = vmatpush1.msra.mxu0 0.0
      %395 = vmatprep.subr.mxu0 0.0
      %396 = vmatpush1.msra.mxu0 0.0
      %397 = vmatprep.subr.mxu0 0.0
      %398 = vmatpush1.msra.mxu0 0.0
      %399 = vmatprep.subr.mxu0 0.0
      %400 = vmatpush1.msra.mxu0 0.0
      %401 = vmatprep.subr.mxu0 0.0
      %402 = vmatpush1.msra.mxu0 0.0
      %403 = vmatprep.subr.mxu0 0.0
      %404 = vmatpush1.msra.mxu0 0.0
      %405 = vmatprep.subr.mxu0 0.0
      %406 = vmatpush1.msra.mxu0 0.0
      %407 = vmatprep.subr.mxu0 0.0
      %408 = vmatpush1.msra.mxu0 %v167
      %409 = vmatprep.subr.mxu0 0.0
      %410 = vmatpush1.msra.mxu0 %v166
      %411 = vmatprep.subr.mxu0 0.0
      %412 = vmatpush1.msra.mxu0 %v165
      %413 = vmatprep.subr.mxu0 0.0
      %414 = vmatpush1.msra.mxu0 %v164
      %415 = vmatprep.subr.mxu0 0.0
      %416 = vmatpush2.msra.mxu0 0.0
      %417 = vmatprep.subr.mxu0 0.0
      %418 = vmatpush2.msra.mxu0 0.0
      %419 = vmatprep.subr.mxu0 0.0
      %420 = vmatpush2.msra.mxu0 0.0
      %421 = vmatprep.subr.mxu0 0.0
      %422 = vmatpush2.msra.mxu0 0.0
      %423 = vmatprep.subr.mxu0 0.0
      %424 = vmatpush2.msra.mxu0 0.0
      %425 = vmatprep.subr.mxu0 0.0
      %426 = vmatpush2.msra.mxu0 0.0
      %427 = vmatprep.subr.mxu0 0.0
      %428 = vmatpush2.msra.mxu0 0.0
      %429 = vmatprep.subr.mxu0 0.0
      %430 = vmatpush2.msra.mxu0 0.0
      %431 = vmatprep.subr.mxu0 0.0
      %432 = vmatpush2.msra.mxu0 0.0
      %433 = vmatprep.subr.mxu0 0.0
      %434 = vmatpush2.msra.mxu0 0.0
      %435 = vmatprep.subr.mxu0 0.0
      %436 = vmatpush2.msra.mxu0 0.0
      %437 = vmatprep.subr.mxu0 0.0
      %438 = vmatpush2.msra.mxu0 0.0
      %439 = vmatprep.subr.mxu0 0.0
      %440 = vmatpush2.msra.mxu0 0.0
      %441 = vmatprep.subr.mxu0 0.0
      %442 = vmatpush2.msra.mxu0 0.0
      %443 = vmatprep.subr.mxu0 0.0
      %444 = vmatpush2.msra.mxu0 0.0
      %445 = vmatprep.subr.mxu0 0.0
      %446 = vmatpush2.msra.mxu0 0.0
      %447 = vmatprep.mubr.f32.mxu0 0.0
      %448 = vmatmul.mubr.f32.gmra.mxu0 %v381
      %v449 = vpop.f32.mrf.mxu0
      %v450 = vadd.f32 0.0, %v449
      %v451 = vpop.f32.mrf.mxu0
      %452 = vdwg.mxu0
      %v453 = vadd.f32 %v380, %v450
      %v454 = vxor.u32 %v453, 2147483648
      %v455 = vmul.f32 %v454, 1.442695
      %v456 = vpow.pop %v455
      %v457 = vadd.f32 %v456, 1.0
      %v458 = vrcp.pop %v457
      %v459 = vmul.f32 1.0, %v458
      %v460 = vtanh.pop %v453
      %v461 = vmul.f32 %v459, %v366
      %463 = vrot.lane.b32.xlu0 %v460, 32
      %v464 = vpop.permute.xlu0 %463
      %v466 = vmul.f32 %v459, %v464
      %468 = vrot.lane.b32.xlu0 %v466, 32
      %v469 = vpop.permute.xlu0 %468
      %v471 = vadd.f32 %v461, %v469
      %v472 = vtanh.pop %v471
      %474 = vrot.lane.b32.xlu0 %v472, 32
      %v475 = vpop.permute.xlu0 %474
      %v477 = vmul.f32 %v459, %v475
      %479 = vrot.lane.b32.xlu0 %v477, 64
      %v480 = vpop.permute.xlu0 %479
      %s482 = scalar_lea.vmem %s163, 4
      %483 = vst.msk [vmem:[%s482] sm:$0x3] %vm272, %v480
      %s484 = scalar_lea.vmem %s153, 6
      %v485 = vld [vmem:[%s484] sm:$0x3]
      %v486 = vsel %vm169, %v480, 0
      %488 = vmatprep.subr.mxu0 0.0
      %489 = vmatpush1.msra.mxu0 0.0
      %490 = vmatprep.subr.mxu0 0.0
      %491 = vmatpush1.msra.mxu0 0.0
      %492 = vmatprep.subr.mxu0 0.0
      %493 = vmatpush1.msra.mxu0 0.0
      %494 = vmatprep.subr.mxu0 0.0
      %495 = vmatpush1.msra.mxu0 0.0
      %496 = vmatprep.subr.mxu0 0.0
      %497 = vmatpush1.msra.mxu0 0.0
      %498 = vmatprep.subr.mxu0 0.0
      %499 = vmatpush1.msra.mxu0 0.0
      %500 = vmatprep.subr.mxu0 0.0
      %501 = vmatpush1.msra.mxu0 0.0
      %502 = vmatprep.subr.mxu0 0.0
      %503 = vmatpush1.msra.mxu0 0.0
      %504 = vmatprep.subr.mxu0 0.0
      %505 = vmatpush1.msra.mxu0 0.0
      %506 = vmatprep.subr.mxu0 0.0
      %507 = vmatpush1.msra.mxu0 0.0
      %508 = vmatprep.subr.mxu0 0.0
      %509 = vmatpush1.msra.mxu0 0.0
      %510 = vmatprep.subr.mxu0 0.0
      %511 = vmatpush1.msra.mxu0 0.0
      %512 = vmatprep.subr.mxu0 0.0
      %513 = vmatpush1.msra.mxu0 %v167
      %514 = vmatprep.subr.mxu0 0.0
      %515 = vmatpush1.msra.mxu0 %v166
      %516 = vmatprep.subr.mxu0 0.0
      %517 = vmatpush1.msra.mxu0 %v165
      %518 = vmatprep.subr.mxu0 0.0
      %519 = vmatpush1.msra.mxu0 %v164
      %520 = vmatprep.subr.mxu0 0.0
      %521 = vmatpush2.msra.mxu0 0.0
      %522 = vmatprep.subr.mxu0 0.0
      %523 = vmatpush2.msra.mxu0 0.0
      %524 = vmatprep.subr.mxu0 0.0
      %525 = vmatpush2.msra.mxu0 0.0
      %526 = vmatprep.subr.mxu0 0.0
      %527 = vmatpush2.msra.mxu0 0.0
      %528 = vmatprep.subr.mxu0 0.0
      %529 = vmatpush2.msra.mxu0 0.0
      %530 = vmatprep.subr.mxu0 0.0
      %531 = vmatpush2.msra.mxu0 0.0
      %532 = vmatprep.subr.mxu0 0.0
      %533 = vmatpush2.msra.mxu0 0.0
      %534 = vmatprep.subr.mxu0 0.0
      %535 = vmatpush2.msra.mxu0 0.0
      %536 = vmatprep.subr.mxu0 0.0
      %537 = vmatpush2.msra.mxu0 0.0
      %538 = vmatprep.subr.mxu0 0.0
      %539 = vmatpush2.msra.mxu0 0.0
      %540 = vmatprep.subr.mxu0 0.0
      %541 = vmatpush2.msra.mxu0 0.0
      %542 = vmatprep.subr.mxu0 0.0
      %543 = vmatpush2.msra.mxu0 0.0
      %544 = vmatprep.subr.mxu0 0.0
      %545 = vmatpush2.msra.mxu0 0.0
      %546 = vmatprep.subr.mxu0 0.0
      %547 = vmatpush2.msra.mxu0 0.0
      %548 = vmatprep.subr.mxu0 0.0
      %549 = vmatpush2.msra.mxu0 0.0
      %550 = vmatprep.subr.mxu0 0.0
      %551 = vmatpush2.msra.mxu0 0.0
      %552 = vmatprep.mubr.f32.mxu0 0.0
      %553 = vmatmul.mubr.f32.gmra.mxu0 %v486
      %v554 = vpop.f32.mrf.mxu0
      %v555 = vadd.f32 0.0, %v554
      %v556 = vpop.f32.mrf.mxu0
      %557 = vdwg.mxu0
      %v558 = vadd.f32 %v485, %v555
      %v559 = vxor.u32 %v558, 2147483648
      %v560 = vmul.f32 %v559, 1.442695
      %v561 = vpow.pop %v560
      %v562 = vadd.f32 %v561, 1.0
      %v563 = vrcp.pop %v562
      %v564 = vmul.f32 1.0, %v563
      %v565 = vtanh.pop %v558
      %v566 = vmul.f32 %v564, %v471
      %568 = vrot.lane.b32.xlu0 %v565, 32
      %v569 = vpop.permute.xlu0 %568
      %v571 = vmul.f32 %v564, %v569
      %573 = vrot.lane.b32.xlu0 %v571, 32
      %v574 = vpop.permute.xlu0 %573
      %v576 = vadd.f32 %v566, %v574
      %v577 = vtanh.pop %v576
      %579 = vrot.lane.b32.xlu0 %v577, 32
      %v580 = vpop.permute.xlu0 %579
      %v582 = vmul.f32 %v564, %v580
      %584 = vrot.lane.b32.xlu0 %v582, 64
      %v585 = vpop.permute.xlu0 %584
      %s587 = scalar_lea.vmem %s163, 6
      %588 = vst.msk [vmem:[%s587] sm:$0x3] %vm272, %v585
      %s589 = scalar_lea.vmem %s153, 8
      %v590 = vld [vmem:[%s589] sm:$0x3]
      %v591 = vsel %vm169, %v585, 0
      %593 = vmatprep.subr.mxu0 0.0
      %594 = vmatpush1.msra.mxu0 0.0
      %595 = vmatprep.subr.mxu0 0.0
      %596 = vmatpush1.msra.mxu0 0.0
      %597 = vmatprep.subr.mxu0 0.0
      %598 = vmatpush1.msra.mxu0 0.0
      %599 = vmatprep.subr.mxu0 0.0
      %600 = vmatpush1.msra.mxu0 0.0
      %601 = vmatprep.subr.mxu0 0.0
      %602 = vmatpush1.msra.mxu0 0.0
      %603 = vmatprep.subr.mxu0 0.0
      %604 = vmatpush1.msra.mxu0 0.0
      %605 = vmatprep.subr.mxu0 0.0
      %606 = vmatpush1.msra.mxu0 0.0
      %607 = vmatprep.subr.mxu0 0.0
      %608 = vmatpush1.msra.mxu0 0.0
      %609 = vmatprep.subr.mxu0 0.0
      %610 = vmatpush1.msra.mxu0 0.0
      %611 = vmatprep.subr.mxu0 0.0
      %612 = vmatpush1.msra.mxu0 0.0
      %613 = vmatprep.subr.mxu0 0.0
      %614 = vmatpush1.msra.mxu0 0.0
      %615 = vmatprep.subr.mxu0 0.0
      %616 = vmatpush1.msra.mxu0 0.0
      %617 = vmatprep.subr.mxu0 0.0
      %618 = vmatpush1.msra.mxu0 %v167
      %619 = vmatprep.subr.mxu0 0.0
      %620 = vmatpush1.msra.mxu0 %v166
      %621 = vmatprep.subr.mxu0 0.0
      %622 = vmatpush1.msra.mxu0 %v165
      %623 = vmatprep.subr.mxu0 0.0
      %624 = vmatpush1.msra.mxu0 %v164
      %625 = vmatprep.subr.mxu0 0.0
      %626 = vmatpush2.msra.mxu0 0.0
      %627 = vmatprep.subr.mxu0 0.0
      %628 = vmatpush2.msra.mxu0 0.0
      %629 = vmatprep.subr.mxu0 0.0
      %630 = vmatpush2.msra.mxu0 0.0
      %631 = vmatprep.subr.mxu0 0.0
      %632 = vmatpush2.msra.mxu0 0.0
      %633 = vmatprep.subr.mxu0 0.0
      %634 = vmatpush2.msra.mxu0 0.0
      %635 = vmatprep.subr.mxu0 0.0
      %636 = vmatpush2.msra.mxu0 0.0
      %637 = vmatprep.subr.mxu0 0.0
      %638 = vmatpush2.msra.mxu0 0.0
      %639 = vmatprep.subr.mxu0 0.0
      %640 = vmatpush2.msra.mxu0 0.0
      %641 = vmatprep.subr.mxu0 0.0
      %642 = vmatpush2.msra.mxu0 0.0
      %643 = vmatprep.subr.mxu0 0.0
      %644 = vmatpush2.msra.mxu0 0.0
      %645 = vmatprep.subr.mxu0 0.0
      %646 = vmatpush2.msra.mxu0 0.0
      %647 = vmatprep.subr.mxu0 0.0
      %648 = vmatpush2.msra.mxu0 0.0
      %649 = vmatprep.subr.mxu0 0.0
      %650 = vmatpush2.msra.mxu0 0.0
      %651 = vmatprep.subr.mxu0 0.0
      %652 = vmatpush2.msra.mxu0 0.0
      %653 = vmatprep.subr.mxu0 0.0
      %654 = vmatpush2.msra.mxu0 0.0
      %655 = vmatprep.subr.mxu0 0.0
      %656 = vmatpush2.msra.mxu0 0.0
      %657 = vmatprep.mubr.f32.mxu0 0.0
      %658 = vmatmul.mubr.f32.gmra.mxu0 %v591
      %v659 = vpop.f32.mrf.mxu0
      %v660 = vadd.f32 0.0, %v659
      %v661 = vpop.f32.mrf.mxu0
      %662 = vdwg.mxu0
      %v663 = vadd.f32 %v590, %v660
      %v664 = vxor.u32 %v663, 2147483648
      %v665 = vmul.f32 %v664, 1.442695
      %v666 = vpow.pop %v665
      %v667 = vadd.f32 %v666, 1.0
      %v668 = vrcp.pop %v667
      %v669 = vmul.f32 1.0, %v668
      %v670 = vtanh.pop %v663
      %v671 = vmul.f32 %v669, %v576
      %673 = vrot.lane.b32.xlu0 %v670, 32
      %v674 = vpop.permute.xlu0 %673
      %v676 = vmul.f32 %v669, %v674
      %678 = vrot.lane.b32.xlu0 %v676, 32
      %v679 = vpop.permute.xlu0 %678
      %v681 = vadd.f32 %v671, %v679
      %v682 = vtanh.pop %v681
      %684 = vrot.lane.b32.xlu0 %v682, 32
      %v685 = vpop.permute.xlu0 %684
      %v687 = vmul.f32 %v669, %v685
      %689 = vrot.lane.b32.xlu0 %v687, 64
      %v690 = vpop.permute.xlu0 %689
      %s692 = scalar_lea.vmem %s163, 8
      %693 = vst.msk [vmem:[%s692] sm:$0x3] %vm272, %v690
      %s694 = scalar_lea.vmem %s153, 10
      %v695 = vld [vmem:[%s694] sm:$0x3]
      %v696 = vsel %vm169, %v690, 0
      %698 = vmatprep.subr.mxu0 0.0
      %699 = vmatpush1.msra.mxu0 0.0
      %700 = vmatprep.subr.mxu0 0.0
      %701 = vmatpush1.msra.mxu0 0.0
      %702 = vmatprep.subr.mxu0 0.0
      %703 = vmatpush1.msra.mxu0 0.0
      %704 = vmatprep.subr.mxu0 0.0
      %705 = vmatpush1.msra.mxu0 0.0
      %706 = vmatprep.subr.mxu0 0.0
      %707 = vmatpush1.msra.mxu0 0.0
      %708 = vmatprep.subr.mxu0 0.0
      %709 = vmatpush1.msra.mxu0 0.0
      %710 = vmatprep.subr.mxu0 0.0
      %711 = vmatpush1.msra.mxu0 0.0
      %712 = vmatprep.subr.mxu0 0.0
      %713 = vmatpush1.msra.mxu0 0.0
      %714 = vmatprep.subr.mxu0 0.0
      %715 = vmatpush1.msra.mxu0 0.0
      %716 = vmatprep.subr.mxu0 0.0
      %717 = vmatpush1.msra.mxu0 0.0
      %718 = vmatprep.subr.mxu0 0.0
      %719 = vmatpush1.msra.mxu0 0.0
      %720 = vmatprep.subr.mxu0 0.0
      %721 = vmatpush1.msra.mxu0 0.0
      %722 = vmatprep.subr.mxu0 0.0
      %723 = vmatpush1.msra.mxu0 %v167
      %724 = vmatprep.subr.mxu0 0.0
      %725 = vmatpush1.msra.mxu0 %v166
      %726 = vmatprep.subr.mxu0 0.0
      %727 = vmatpush1.msra.mxu0 %v165
      %728 = vmatprep.subr.mxu0 0.0
      %729 = vmatpush1.msra.mxu0 %v164
      %730 = vmatprep.subr.mxu0 0.0
      %731 = vmatpush2.msra.mxu0 0.0
      %732 = vmatprep.subr.mxu0 0.0
      %733 = vmatpush2.msra.mxu0 0.0
      %734 = vmatprep.subr.mxu0 0.0
      %735 = vmatpush2.msra.mxu0 0.0
      %736 = vmatprep.subr.mxu0 0.0
      %737 = vmatpush2.msra.mxu0 0.0
      %738 = vmatprep.subr.mxu0 0.0
      %739 = vmatpush2.msra.mxu0 0.0
      %740 = vmatprep.subr.mxu0 0.0
      %741 = vmatpush2.msra.mxu0 0.0
      %742 = vmatprep.subr.mxu0 0.0
      %743 = vmatpush2.msra.mxu0 0.0
      %744 = vmatprep.subr.mxu0 0.0
      %745 = vmatpush2.msra.mxu0 0.0
      %746 = vmatprep.subr.mxu0 0.0
      %747 = vmatpush2.msra.mxu0 0.0
      %748 = vmatprep.subr.mxu0 0.0
      %749 = vmatpush2.msra.mxu0 0.0
      %750 = vmatprep.subr.mxu0 0.0
      %751 = vmatpush2.msra.mxu0 0.0
      %752 = vmatprep.subr.mxu0 0.0
      %753 = vmatpush2.msra.mxu0 0.0
      %754 = vmatprep.subr.mxu0 0.0
      %755 = vmatpush2.msra.mxu0 0.0
      %756 = vmatprep.subr.mxu0 0.0
      %757 = vmatpush2.msra.mxu0 0.0
      %758 = vmatprep.subr.mxu0 0.0
      %759 = vmatpush2.msra.mxu0 0.0
      %760 = vmatprep.subr.mxu0 0.0
      %761 = vmatpush2.msra.mxu0 0.0
      %762 = vmatprep.mubr.f32.mxu0 0.0
      %763 = vmatmul.mubr.f32.gmra.mxu0 %v696
      %v764 = vpop.f32.mrf.mxu0
      %v765 = vadd.f32 0.0, %v764
      %v766 = vpop.f32.mrf.mxu0
      %767 = vdwg.mxu0
      %v768 = vadd.f32 %v695, %v765
      %v769 = vxor.u32 %v768, 2147483648
      %v770 = vmul.f32 %v769, 1.442695
      %v771 = vpow.pop %v770
      %v772 = vadd.f32 %v771, 1.0
      %v773 = vrcp.pop %v772
      %v774 = vmul.f32 1.0, %v773
      %v775 = vtanh.pop %v768
      %v776 = vmul.f32 %v774, %v681
      %778 = vrot.lane.b32.xlu0 %v775, 32
      %v779 = vpop.permute.xlu0 %778
      %v781 = vmul.f32 %v774, %v779
      %783 = vrot.lane.b32.xlu0 %v781, 32
      %v784 = vpop.permute.xlu0 %783
      %v786 = vadd.f32 %v776, %v784
      %v787 = vtanh.pop %v786
      %789 = vrot.lane.b32.xlu0 %v787, 32
      %v790 = vpop.permute.xlu0 %789
      %v792 = vmul.f32 %v774, %v790
      %794 = vrot.lane.b32.xlu0 %v792, 64
      %v795 = vpop.permute.xlu0 %794
      %s797 = scalar_lea.vmem %s163, 10
      %798 = vst.msk [vmem:[%s797] sm:$0x3] %vm272, %v795
      %s799 = scalar_lea.vmem %s153, 12
      %v800 = vld [vmem:[%s799] sm:$0x3]
      %v801 = vsel %vm169, %v795, 0
      %803 = vmatprep.subr.mxu0 0.0
      %804 = vmatpush1.msra.mxu0 0.0
      %805 = vmatprep.subr.mxu0 0.0
      %806 = vmatpush1.msra.mxu0 0.0
      %807 = vmatprep.subr.mxu0 0.0
      %808 = vmatpush1.msra.mxu0 0.0
      %809 = vmatprep.subr.mxu0 0.0
      %810 = vmatpush1.msra.mxu0 0.0
      %811 = vmatprep.subr.mxu0 0.0
      %812 = vmatpush1.msra.mxu0 0.0
      %813 = vmatprep.subr.mxu0 0.0
      %814 = vmatpush1.msra.mxu0 0.0
      %815 = vmatprep.subr.mxu0 0.0
      %816 = vmatpush1.msra.mxu0 0.0
      %817 = vmatprep.subr.mxu0 0.0
      %818 = vmatpush1.msra.mxu0 0.0
      %819 = vmatprep.subr.mxu0 0.0
      %820 = vmatpush1.msra.mxu0 0.0
      %821 = vmatprep.subr.mxu0 0.0
      %822 = vmatpush1.msra.mxu0 0.0
      %823 = vmatprep.subr.mxu0 0.0
      %824 = vmatpush1.msra.mxu0 0.0
      %825 = vmatprep.subr.mxu0 0.0
      %826 = vmatpush1.msra.mxu0 0.0
      %827 = vmatprep.subr.mxu0 0.0
      %828 = vmatpush1.msra.mxu0 %v167
      %829 = vmatprep.subr.mxu0 0.0
      %830 = vmatpush1.msra.mxu0 %v166
      %831 = vmatprep.subr.mxu0 0.0
      %832 = vmatpush1.msra.mxu0 %v165
      %833 = vmatprep.subr.mxu0 0.0
      %834 = vmatpush1.msra.mxu0 %v164
      %835 = vmatprep.subr.mxu0 0.0
      %836 = vmatpush2.msra.mxu0 0.0
      %837 = vmatprep.subr.mxu0 0.0
      %838 = vmatpush2.msra.mxu0 0.0
      %839 = vmatprep.subr.mxu0 0.0
      %840 = vmatpush2.msra.mxu0 0.0
      %841 = vmatprep.subr.mxu0 0.0
      %842 = vmatpush2.msra.mxu0 0.0
      %843 = vmatprep.subr.mxu0 0.0
      %844 = vmatpush2.msra.mxu0 0.0
      %845 = vmatprep.subr.mxu0 0.0
      %846 = vmatpush2.msra.mxu0 0.0
      %847 = vmatprep.subr.mxu0 0.0
      %848 = vmatpush2.msra.mxu0 0.0
      %849 = vmatprep.subr.mxu0 0.0
      %850 = vmatpush2.msra.mxu0 0.0
      %851 = vmatprep.subr.mxu0 0.0
      %852 = vmatpush2.msra.mxu0 0.0
      %853 = vmatprep.subr.mxu0 0.0
      %854 = vmatpush2.msra.mxu0 0.0
      %855 = vmatprep.subr.mxu0 0.0
      %856 = vmatpush2.msra.mxu0 0.0
      %857 = vmatprep.subr.mxu0 0.0
      %858 = vmatpush2.msra.mxu0 0.0
      %859 = vmatprep.subr.mxu0 0.0
      %860 = vmatpush2.msra.mxu0 0.0
      %861 = vmatprep.subr.mxu0 0.0
      %862 = vmatpush2.msra.mxu0 0.0
      %863 = vmatprep.subr.mxu0 0.0
      %864 = vmatpush2.msra.mxu0 0.0
      %865 = vmatprep.subr.mxu0 0.0
      %866 = vmatpush2.msra.mxu0 0.0
      %867 = vmatprep.mubr.f32.mxu0 0.0
      %868 = vmatmul.mubr.f32.gmra.mxu0 %v801
      %v869 = vpop.f32.mrf.mxu0
      %v870 = vadd.f32 0.0, %v869
      %v871 = vpop.f32.mrf.mxu0
      %872 = vdwg.mxu0
      %v873 = vadd.f32 %v800, %v870
      %v874 = vxor.u32 %v873, 2147483648
      %v875 = vmul.f32 %v874, 1.442695
      %v876 = vpow.pop %v875
      %v877 = vadd.f32 %v876, 1.0
      %v878 = vrcp.pop %v877
      %v879 = vmul.f32 1.0, %v878
      %v880 = vtanh.pop %v873
      %v881 = vmul.f32 %v879, %v786
      %883 = vrot.lane.b32.xlu0 %v880, 32
      %v884 = vpop.permute.xlu0 %883
      %v886 = vmul.f32 %v879, %v884
      %888 = vrot.lane.b32.xlu0 %v886, 32
      %v889 = vpop.permute.xlu0 %888
      %v891 = vadd.f32 %v881, %v889
      %v892 = vtanh.pop %v891
      %894 = vrot.lane.b32.xlu0 %v892, 32
      %v895 = vpop.permute.xlu0 %894
      %v897 = vmul.f32 %v879, %v895
      %899 = vrot.lane.b32.xlu0 %v897, 64
      %v900 = vpop.permute.xlu0 %899
      %s902 = scalar_lea.vmem %s163, 12
      %903 = vst.msk [vmem:[%s902] sm:$0x3] %vm272, %v900
      %s904 = scalar_lea.vmem %s153, 14
      %v905 = vld [vmem:[%s904] sm:$0x3]
      %v906 = vsel %vm169, %v900, 0
      %908 = vmatprep.subr.mxu0 0.0
      %909 = vmatpush1.msra.mxu0 0.0
      %910 = vmatprep.subr.mxu0 0.0
      %911 = vmatpush1.msra.mxu0 0.0
      %912 = vmatprep.subr.mxu0 0.0
      %913 = vmatpush1.msra.mxu0 0.0
      %914 = vmatprep.subr.mxu0 0.0
      %915 = vmatpush1.msra.mxu0 0.0
      %916 = vmatprep.subr.mxu0 0.0
      %917 = vmatpush1.msra.mxu0 0.0
      %918 = vmatprep.subr.mxu0 0.0
      %919 = vmatpush1.msra.mxu0 0.0
      %920 = vmatprep.subr.mxu0 0.0
      %921 = vmatpush1.msra.mxu0 0.0
      %922 = vmatprep.subr.mxu0 0.0
      %923 = vmatpush1.msra.mxu0 0.0
      %924 = vmatprep.subr.mxu0 0.0
      %925 = vmatpush1.msra.mxu0 0.0
      %926 = vmatprep.subr.mxu0 0.0
      %927 = vmatpush1.msra.mxu0 0.0
      %928 = vmatprep.subr.mxu0 0.0
      %929 = vmatpush1.msra.mxu0 0.0
      %930 = vmatprep.subr.mxu0 0.0
      %931 = vmatpush1.msra.mxu0 0.0
      %932 = vmatprep.subr.mxu0 0.0
      %933 = vmatpush1.msra.mxu0 %v167
      %934 = vmatprep.subr.mxu0 0.0
      %935 = vmatpush1.msra.mxu0 %v166
      %936 = vmatprep.subr.mxu0 0.0
      %937 = vmatpush1.msra.mxu0 %v165
      %938 = vmatprep.subr.mxu0 0.0
      %939 = vmatpush1.msra.mxu0 %v164
      %940 = vmatprep.subr.mxu0 0.0
      %941 = vmatpush2.msra.mxu0 0.0
      %942 = vmatprep.subr.mxu0 0.0
      %943 = vmatpush2.msra.mxu0 0.0
      %944 = vmatprep.subr.mxu0 0.0
      %945 = vmatpush2.msra.mxu0 0.0
      %946 = vmatprep.subr.mxu0 0.0
      %947 = vmatpush2.msra.mxu0 0.0
      %948 = vmatprep.subr.mxu0 0.0
      %949 = vmatpush2.msra.mxu0 0.0
      %950 = vmatprep.subr.mxu0 0.0
      %951 = vmatpush2.msra.mxu0 0.0
      %952 = vmatprep.subr.mxu0 0.0
      %953 = vmatpush2.msra.mxu0 0.0
      %954 = vmatprep.subr.mxu0 0.0
      %955 = vmatpush2.msra.mxu0 0.0
      %956 = vmatprep.subr.mxu0 0.0
      %957 = vmatpush2.msra.mxu0 0.0
      %958 = vmatprep.subr.mxu0 0.0
      %959 = vmatpush2.msra.mxu0 0.0
      %960 = vmatprep.subr.mxu0 0.0
      %961 = vmatpush2.msra.mxu0 0.0
      %962 = vmatprep.subr.mxu0 0.0
      %963 = vmatpush2.msra.mxu0 0.0
      %964 = vmatprep.subr.mxu0 0.0
      %965 = vmatpush2.msra.mxu0 0.0
      %966 = vmatprep.subr.mxu0 0.0
      %967 = vmatpush2.msra.mxu0 0.0
      %968 = vmatprep.subr.mxu0 0.0
      %969 = vmatpush2.msra.mxu0 0.0
      %970 = vmatprep.subr.mxu0 0.0
      %971 = vmatpush2.msra.mxu0 0.0
      %972 = vmatprep.mubr.f32.mxu0 0.0
      %973 = vmatmul.mubr.f32.gmra.mxu0 %v906
      %v974 = vpop.f32.mrf.mxu0
      %v975 = vadd.f32 0.0, %v974
      %v976 = vpop.f32.mrf.mxu0
      %977 = vdwg.mxu0
      %v978 = vadd.f32 %v905, %v975
      %v979 = vxor.u32 %v978, 2147483648
      %v980 = vmul.f32 %v979, 1.442695
      %v981 = vpow.pop %v980
      %v982 = vadd.f32 %v981, 1.0
      %v983 = vrcp.pop %v982
      %v984 = vmul.f32 1.0, %v983
      %v985 = vtanh.pop %v978
      %v986 = vmul.f32 %v984, %v891
      %988 = vrot.lane.b32.xlu0 %v985, 32
      %v989 = vpop.permute.xlu0 %988
      %v991 = vmul.f32 %v984, %v989
      %993 = vrot.lane.b32.xlu0 %v991, 32
      %v994 = vpop.permute.xlu0 %993
      %v996 = vadd.f32 %v986, %v994
      %v997 = vtanh.pop %v996
      %999 = vrot.lane.b32.xlu0 %v997, 32
      %v1000 = vpop.permute.xlu0 %999
      %v1002 = vmul.f32 %v984, %v1000
      %1004 = vrot.lane.b32.xlu0 %v1002, 64
      %v1005 = vpop.permute.xlu0 %1004
      %s1007 = scalar_lea.vmem %s163, 14
      %1008 = vst.msk [vmem:[%s1007] sm:$0x3] %vm272, %v1005
      %p1009 = scmp.lt.s32.totalorder %s13, 1
      %s1010 = scalar_select %p1009, %s13, 1
      %s1011 = smul.addr %s1010, 8
      %s1012 = smul.addr %s1011, 2
      %s1013 = scalar_lea.vmem %s2, %s1012
      // Predicated region
      $region29: #{_rnn_forward.2} parent=27 // pred_check
        %p1014 = pneg %p83
      $region30: #{_rnn_forward.2} parent=27 // pred_check_branch
        %1016 = sbr.rel (%p1014) target = $region32
      $region31: #{_rnn_forward.2} parent=27 // pred_region
        _
      $region32: #{_rnn_forward.2} parent=27 // pred_fallthru
        _
    $region28: #{_rnn_forward.2} parent=5 // pred_fallthru
      _
    %p1017 = scmp.le.s32.totalorder 2, %s8
    // Predicated region
    $region33: #{_rnn_forward.2} parent=5 // pred_check
      %p1018 = pneg %p1017
    $region34: #{_rnn_forward.2} parent=5 // pred_check_branch
      %1020 = sbr.rel (%p1018) target = $region36
    $region35: #{_rnn_forward.2} parent=5 // pred_region
      %s1021 = ssub.s32 %s8, 2
      // Predicated region
      $region37: #{_rnn_forward.2} parent=35 // pred_check
        %p1022 = pneg %p89
      $region38: #{_rnn_forward.2} parent=35 // pred_check_branch
        %1024 = sbr.rel (%p1022) target = $region40
      $region39: #{_rnn_forward.2} parent=35 // pred_region
        %p1025 = scmp.lt.s32.totalorder %s14, 1
        %s1026 = scalar_select %p1025, %s14, 1
        %s1027 = smul.addr %s1026, 8
        %s1028 = smul.addr %s1027, 2
        %s1029 = scalar_lea.vmem %s2, %s1028
      $region40: #{_rnn_forward.2} parent=35 // pred_fallthru
        _
    $region36: #{_rnn_forward.2} parent=5 // pred_fallthru
      _
  $region6: #{_rnn_forward.2} parent=0 // loop_footer
    %s12 = sadd.s32 1, %s8
  $region7: #{_rnn_forward.2} parent=0 // loop_footer_branch
    %7 = sbr.rel target = $region3
  $region8: #{_rnn_forward.2} parent=0 // loop_exit
    _

</llo_original>
